<compile_context>
chip_gen: v5e
topology: v5e:2x2
jax: 0.10.0
libtpu: 0.0.40
codegen_flags: <defaults>
</compile_context>

<pallas_src>
import functools
import math

import jax
import jax.numpy as jnp
from jax.experimental import pallas as pl
from jax.experimental.pallas import tpu as pltpu


_SQRT_2_OVER_PI = math.sqrt(2.0 / math.pi)


def _gelu_tanh(x):
    # torch.nn.GELU(approximate='tanh'):
    #   0.5*x*(1 + tanh(c*(x + 0.044715*x^3)))  ==  x * sigmoid(2*c*(x + 0.044715*x^3))
    # The sigmoid form keeps the transcendental on the EUP and drops two VALU
    # ops per element.
    z = 2.0 * _SQRT_2_OVER_PI * (x + 0.044715 * (x * x * x))
    return x / (1.0 + jnp.exp(-z))


def _round_up(a, b):
    return ((a + b - 1) // b) * b


def _pick_m_tiling(M, desired_tm):
    """Pick (tm, M_pad).  Prefers exact divisors of M (no jnp.pad round-trip)
    and >= 2 tiles when there is enough work (v7x megacore)."""
    desired_tm = max(8, (desired_tm // 8) * 8)
    # Ensure at least two M tiles once there is enough work for two TCs.
    if M >= 1024:
        desired_tm = min(desired_tm, _round_up((M + 1) // 2, 8))
    if M <= desired_tm:
        return M, M                       # single full-extent tile, no padding
    if M % 8 == 0:
        lo = max(8, ((desired_tm // 2) // 8) * 8)
        for t in range(desired_tm, lo - 1, -8):
            if M % t == 0:
                return t, M               # exact tiling, no padding
    # Fall back: pad M up to a multiple of desired_tm.
    return desired_tm, _round_up(M, desired_tm)


# ----------------------------------------------------------------------------
# Kernels
# ----------------------------------------------------------------------------
def _mlp_kernel_resident(x_ref, wfc_ref, bfc_ref, wproj_ref, bproj_ref, o_ref,
                         *, compute_dtype):
    # Weights are grid-resident (constant index_map) -> one DMA for the whole
    # kernel.  One M tile per grid step, no accumulator needed.
    x = x_ref[...]
    wfc = wfc_ref[...]
    wproj = wproj_ref[...]
    if compute_dtype is not None:
        x = x.astype(compute_dtype)
        wfc = wfc.astype(compute_dtype)
        wproj = wproj.astype(compute_dtype)

    h = jnp.dot(x, wfc, preferred_element_type=jnp.float32)
    h = _gelu_tanh(h + bfc_ref[...].astype(jnp.float32))
    y = jnp.dot(h.astype(wproj.dtype), wproj, preferred_element_type=jnp.float32)
    o_ref[...] = (y + bproj_ref[...].astype(jnp.float32)).astype(o_ref.dtype)


def _mlp_kernel_tiled(x_ref, wfc_ref, bfc_ref, wproj_ref, bproj_ref, o_ref,
                      acc_ref, *, compute_dtype):
    # H-tiled fallback: acc += gelu(x @ w_fc[:, hk] + b_fc[hk]) @ w_proj[hk, :]
    hk = pl.program_id(1)

    @pl.when(hk == 0)
    def _():
        acc_ref[...] = jnp.zeros_like(acc_ref)

    x = x_ref[...]
    wfc = wfc_ref[...]
    wproj = wproj_ref[...]
    if compute_dtype is not None:
        x = x.astype(compute_dtype)
        wfc = wfc.astype(compute_dtype)
        wproj = wproj.astype(compute_dtype)

    h = jnp.dot(x, wfc, preferred_element_type=jnp.float32)
    h = _gelu_tanh(h + bfc_ref[...].astype(jnp.float32))
    acc_ref[...] += jnp.dot(h.astype(wproj.dtype), wproj,
                            preferred_element_type=jnp.float32)

    @pl.when(hk == pl.num_programs(1) - 1)
    def _():
        o_ref[...] = (acc_ref[...]
                      + bproj_ref[...].astype(jnp.float32)).astype(o_ref.dtype)


# ----------------------------------------------------------------------------
# Wrapper
# ----------------------------------------------------------------------------
def mlp_pallas(x, w_fc, b_fc, w_proj, b_proj, *, tm=1024, th=None,
               use_bf16_matmul=False, vmem_budget_bytes=None):
    """x: (B, T, C).  w_fc: (C, 4C), b_fc: (4C,), w_proj: (4C, C), b_proj: (C,).

    Returns (B, T, C) in x.dtype.  Works for f32 or bf16 operands.
    `use_bf16_matmul=True` casts f32 operands to bf16 inside the kernel
    (f32 accumulation kept) for native-MXU throughput on v6e/v7x.
    """
    B, T, C = x.shape
    H = w_fc.shape[1]                      # 4*C
    M = B * T
    isz = jnp.dtype(x.dtype).itemsize

    compute_dtype = None
    if use_bf16_matmul and x.dtype == jnp.float32:
        compute_dtype = jnp.bfloat16

    # --- generation-aware VMEM budget ----------------------------------------
    try:
        info = pltpu.get_tpu_info()
        vmem_cap = int(getattr(info, "vmem_capacity_bytes", 64 * 1024 * 1024))
    except Exception:
        vmem_cap = 64 * 1024 * 1024        # v7x-safe assumption
    hw_budget = (vmem_cap * 3) // 4        # leave headroom for compiler scratch
    budget = vmem_budget_bytes if vmem_budget_bytes is not None else hw_budget

    # --- M tiling -------------------------------------------------------------
    tm, M_pad = _pick_m_tiling(M, tm)
    num_m = M_pad // tm

    # --- footprint models (double-buffer allowance on inputs/outputs) --------
    def resident_footprint(tm_):
        w = 2 * (2 * C * H + H + C) * isz          # w_fc + w_proj + biases
        io = 2 * 2 * tm_ * C * isz                 # x tile + out tile
        tmp = 2 * tm_ * H * 4                      # f32 hidden + gelu temps
        return w + io + tmp

    def tiled_footprint(tm_, th_):
        w = 2 * (2 * C * th_ + th_ + C) * isz
        io = 2 * 2 * tm_ * C * isz
        acc = tm_ * C * 4
        tmp = 2 * tm_ * th_ * 4
        return w + io + acc + tmp

    if th is None:
        resident = resident_footprint(tm) <= budget
    else:
        resident = th >= H

    # --- reshape / (rare) pad -------------------------------------------------
    x2 = x.reshape(M, C)
    if M_pad != M:
        x2 = jnp.pad(x2, ((0, M_pad - M), (0, 0)))
    b_fc2 = b_fc.reshape(1, H)
    b_proj2 = b_proj.reshape(1, C)

    if resident:
        kernel = functools.partial(_mlp_kernel_resident,
                                   compute_dtype=compute_dtype)
        cost = pl.CostEstimate(
            flops=4 * M_pad * C * H,
            transcendentals=M_pad * H,
            bytes_accessed=(2 * M_pad * C + 2 * C * H + H + C) * isz,
        )
        out = pl.pallas_call(
            kernel,
            out_shape=jax.ShapeDtypeStruct((M_pad, C), x.dtype),
            grid_spec=pltpu.PrefetchScalarGridSpec(
                num_scalar_prefetch=0,
                grid=(num_m,),
                in_specs=[
                    pl.BlockSpec((tm, C), lambda i: (i, 0)),   # x tile
                    pl.BlockSpec((C, H), lambda i: (0, 0)),    # w_fc (resident)
                    pl.BlockSpec((1, H), lambda i: (0, 0)),    # b_fc (resident)
                    pl.BlockSpec((H, C), lambda i: (0, 0)),    # w_proj (resident)
                    pl.BlockSpec((1, C), lambda i: (0, 0)),    # b_proj (resident)
                ],
                out_specs=pl.BlockSpec((tm, C), lambda i: (i, 0)),
            ),
            compiler_params=pltpu.CompilerParams(
                dimension_semantics=("parallel",),
                vmem_limit_bytes=hw_budget,
            ),
            cost_estimate=cost,
        )(x2, w_fc, b_fc2, w_proj, b_proj2)
    else:
        # --- H tile selection -------------------------------------------------
        if th is not None:
            t = min(th, H)
            t = (t // 128) * 128
            while t >= 128 and H % t != 0:
                t -= 128
            th_sel = t if (t >= 128 and H % t == 0) else H
        else:
            cands = [t for t in range(128, H + 1, 128) if H % t == 0]
            if not cands:
                cands = [H]
            th_sel = cands[0]
            for t in reversed(cands):          # largest chunk that fits budget
                if tiled_footprint(tm, t) <= budget:
                    th_sel = t
                    break
        num_h = H // th_sel

        # TODO(synk): x is constant across the H axis; pl.Buffered(1) on its
        # BlockSpec would reclaim one buffer of VMEM for bigger weight chunks.
        kernel = functools.partial(_mlp_kernel_tiled,
                                   compute_dtype=compute_dtype)
        cost = pl.CostEstimate(
            flops=4 * M_pad * C * H,
            transcendentals=M_pad * H,
            bytes_accessed=(2 * M_pad * C
                            + num_m * (2 * C * H + H + C)) * isz,
        )
        out = pl.pallas_call(
            kernel,
            out_shape=jax.ShapeDtypeStruct((M_pad, C), x.dtype),
            grid_spec=pltpu.PrefetchScalarGridSpec(
                num_scalar_prefetch=0,
                grid=(num_m, num_h),
                in_specs=[
                    pl.BlockSpec((tm, C), lambda i, k: (i, 0)),       # x tile
                    pl.BlockSpec((C, th_sel), lambda i, k: (0, k)),   # w_fc chunk
                    pl.BlockSpec((1, th_sel), lambda i, k: (0, k)),   # b_fc chunk
                    pl.BlockSpec((th_sel, C), lambda i, k: (k, 0)),   # w_proj chunk
                    pl.BlockSpec((1, C), lambda i, k: (0, 0)),        # b_proj
                ],
                out_specs=pl.BlockSpec((tm, C), lambda i, k: (i, 0)),
                scratch_shapes=[pltpu.VMEM((tm, C), jnp.float32)],
            ),
            compiler_params=pltpu.CompilerParams(
                dimension_semantics=("parallel", "arbitrary"),
                vmem_limit_bytes=hw_budget,
            ),
            cost_estimate=cost,
        )(x2, w_fc, b_fc2, w_proj, b_proj2)

    if M_pad != M:
        out = out[:M]
    return out.reshape(B, T, C)


def mlp_ref(x, w_fc, b_fc, w_proj, b_proj):
    # Reference uses the literal tanh form (matches torch GELU(approximate='tanh')).
    c = math.sqrt(2.0 / math.pi)
    h = jnp.einsum("btc,ch->bth", x, w_fc) + b_fc
    h = 0.5 * h * (1.0 + jnp.tanh(c * (h + 0.044715 * h * h * h)))
    return jnp.einsum("bth,hc->btc", h, w_proj) + b_proj


if __name__ == "__main__":
    # Small GPT-2-style config: batch=2, seq=8, n_embd=32 -> hidden=128.
    B, T, C = 2, 8, 32
    H = 4 * C

    key = jax.random.PRNGKey(0)
    kx, k1, k2, k3, k4 = jax.random.split(key, 5)

    x = jax.random.normal(kx, (B, T, C), dtype=jnp.float32)
    # nn.Linear-style init (uniform), stored already transposed as (in, out).
    w_fc = jax.random.uniform(k1, (C, H), jnp.float32,
                              -1.0 / math.sqrt(C), 1.0 / math.sqrt(C))
    b_fc = jax.random.uniform(k2, (H,), jnp.float32,
                              -1.0 / math.sqrt(C), 1.0 / math.sqrt(C))
    w_proj = jax.random.uniform(k3, (H, C), jnp.float32,
                                -1.0 / math.sqrt(H), 1.0 / math.sqrt(H))
    b_proj = jax.random.uniform(k4, (C,), jnp.float32,
                                -1.0 / math.sqrt(H), 1.0 / math.sqrt(H))

    # 1) Resident-weight path, f32.
    out = jax.block_until_ready(mlp_pallas(x, w_fc, b_fc, w_proj, b_proj))
    ref = mlp_ref(x, w_fc, b_fc, w_proj, b_proj)
    assert out.shape == (B, T, C)
    assert jnp.allclose(out, ref, atol=1e-5, rtol=1e-5), "mismatch vs reference"

    # 2) Odd (non-multiple-of-8) token count: single full-extent tile, no pad.
    xb = jax.random.normal(kx, (3, 7, C), dtype=jnp.float32)
    out_b = jax.block_until_ready(mlp_pallas(xb, w_fc, b_fc, w_proj, b_proj))
    ref_b = mlp_ref(xb, w_fc, b_fc, w_proj, b_proj)
    assert jnp.allclose(out_b, ref_b, atol=1e-5, rtol=1e-5), "odd-M mismatch"

    # 3) bf16 operands (native MXU dtype).
    out_bf16 = jax.block_until_ready(
        mlp_pallas(x.astype(jnp.bfloat16), w_fc.astype(jnp.bfloat16),
                   b_fc.astype(jnp.bfloat16), w_proj.astype(jnp.bfloat16),
                   b_proj.astype(jnp.bfloat16)))
    assert jnp.allclose(out_bf16.astype(jnp.float32), ref,
                        atol=3e-2, rtol=3e-2), "bf16 mismatch"

    # 4) In-kernel bf16 matmul on f32 operands (flagged, looser tolerance).
    out_c = jax.block_until_ready(
        mlp_pallas(x, w_fc, b_fc, w_proj, b_proj, use_bf16_matmul=True))
    assert jnp.allclose(out_c, ref, atol=3e-2, rtol=3e-2), "bf16-matmul mismatch"

    # 5) Force the H-tiled accumulator path (tiny VMEM budget) at C=64, H=256
    #    so the hidden axis spans multiple grid steps.
    C2, H2 = 64, 256
    x2 = jax.random.normal(k1, (2, 16, C2), dtype=jnp.float32)
    w_fc2 = jax.random.uniform(k2, (C2, H2), jnp.float32,
                               -1.0 / math.sqrt(C2), 1.0 / math.sqrt(C2))
    b_fc_2 = jax.random.uniform(k3, (H2,), jnp.float32,
                                -1.0 / math.sqrt(C2), 1.0 / math.sqrt(C2))
    w_proj2 = jax.random.uniform(k4, (H2, C2), jnp.float32,
                                 -1.0 / math.sqrt(H2), 1.0 / math.sqrt(H2))
    b_proj2 = jax.random.uniform(kx, (C2,), jnp.float32,
                                 -1.0 / math.sqrt(H2), 1.0 / math.sqrt(H2))
    out_t = jax.block_until_ready(
        mlp_pallas(x2, w_fc2, b_fc_2, w_proj2, b_proj2,
                   vmem_budget_bytes=64 * 1024))
    ref_t = mlp_ref(x2, w_fc2, b_fc_2, w_proj2, b_proj2)
    assert jnp.allclose(out_t, ref_t, atol=1e-4, rtol=1e-4), "H-tiled mismatch"

    print("KERNEL_OK")
</pallas_src>

<mosaic_0001>
module attributes {stable_mosaic.version = 11 : i64} {
  func.func @_mlp_kernel_resident(%arg0: i32, %arg1: memref<16x32xf32, #tpu.memory_space<vmem>>, %arg2: memref<32x128xf32, #tpu.memory_space<vmem>>, %arg3: memref<1x128xf32, #tpu.memory_space<vmem>>, %arg4: memref<128x32xf32, #tpu.memory_space<vmem>>, %arg5: memref<1x32xf32, #tpu.memory_space<vmem>>, %arg6: memref<16x32xf32, #tpu.memory_space<vmem>>) attributes {dimension_semantics = [#tpu.dimension_semantics<parallel>], iteration_bounds = array<i64: 1>, scalar_prefetch = 0 : i64, scratch_operands = 0 : i64, tpu.core_type = #tpu.core_type<tc>, window_params = [{transform_indices = @transform_0, window_bounds = array<i64: 16, 32>}, {pipeline_mode = #tpu.pipeline_mode<synchronous>, transform_indices = @transform_1, window_bounds = array<i64: 32, 128>}, {pipeline_mode = #tpu.pipeline_mode<synchronous>, transform_indices = @transform_2, window_bounds = array<i64: 1, 128>}, {pipeline_mode = #tpu.pipeline_mode<synchronous>, transform_indices = @transform_3, window_bounds = array<i64: 128, 32>}, {pipeline_mode = #tpu.pipeline_mode<synchronous>, transform_indices = @transform_4, window_bounds = array<i64: 1, 32>}, {transform_indices = @transform_5, window_bounds = array<i64: 16, 32>}]} {
    %c0 = arith.constant 0 : index
    %c0_0 = arith.constant 0 : index
    %0 = vector.load %arg1[%c0, %c0_0] : memref<16x32xf32, #tpu.memory_space<vmem>>, vector<16x32xf32>
    %c0_1 = arith.constant 0 : index
    %c0_2 = arith.constant 0 : index
    %1 = vector.load %arg2[%c0_1, %c0_2] : memref<32x128xf32, #tpu.memory_space<vmem>>, vector<32x128xf32>
    %c0_3 = arith.constant 0 : index
    %c0_4 = arith.constant 0 : index
    %2 = vector.load %arg4[%c0_3, %c0_4] : memref<128x32xf32, #tpu.memory_space<vmem>>, vector<128x32xf32>
    %cst = arith.constant dense<0.000000e+00> : vector<16x128xf32>
    %3 = tpu.matmul %0, %1, %cst {dimension_numbers = #tpu.dot_dimension_numbers<[1], [0], [0], [1], [0, 0, 1, 1], [], []>} : vector<16x32xf32>, vector<32x128xf32>, vector<16x128xf32> -> vector<16x128xf32>
    %c0_5 = arith.constant 0 : index
    %c0_6 = arith.constant 0 : index
    %4 = vector.load %arg3[%c0_5, %c0_6] : memref<1x128xf32, #tpu.memory_space<vmem>>, vector<1x128xf32>
    %5 = vector.broadcast %4 : vector<1x128xf32> to vector<16x128xf32>
    %6 = arith.addf %3, %5 : vector<16x128xf32>
    %7 = arith.mulf %6, %6 : vector<16x128xf32>
    %8 = arith.mulf %7, %6 : vector<16x128xf32>
    %cst_7 = arith.constant 4.471500e-02 : f32
    %9 = vector.broadcast %cst_7 : f32 to vector<16x128xf32>
    %10 = arith.mulf %9, %8 : vector<16x128xf32>
    %11 = arith.addf %6, %10 : vector<16x128xf32>
    %cst_8 = arith.constant 1.59576917 : f32
    %12 = vector.broadcast %cst_8 : f32 to vector<16x128xf32>
    %13 = arith.mulf %12, %11 : vector<16x128xf32>
    %cst_9 = arith.constant 0.000000e+00 : f32
    %14 = vector.broadcast %cst_9 : f32 to vector<16x128xf32>
    %15 = arith.subf %14, %13 : vector<16x128xf32>
    %16 = math.exp %15 : vector<16x128xf32>
    %cst_10 = arith.constant 1.000000e+00 : f32
    %17 = vector.broadcast %cst_10 : f32 to vector<16x128xf32>
    %18 = arith.addf %17, %16 : vector<16x128xf32>
    %19 = arith.divf %6, %18 : vector<16x128xf32>
    %cst_11 = arith.constant dense<0.000000e+00> : vector<16x32xf32>
    %20 = tpu.matmul %19, %2, %cst_11 {dimension_numbers = #tpu.dot_dimension_numbers<[1], [0], [0], [1], [0, 0, 1, 1], [], []>} : vector<16x128xf32>, vector<128x32xf32>, vector<16x32xf32> -> vector<16x32xf32>
    %c0_12 = arith.constant 0 : index
    %c0_13 = arith.constant 0 : index
    %21 = vector.load %arg5[%c0_12, %c0_13] : memref<1x32xf32, #tpu.memory_space<vmem>>, vector<1x32xf32>
    %22 = vector.broadcast %21 : vector<1x32xf32> to vector<16x32xf32>
    %23 = arith.addf %20, %22 : vector<16x32xf32>
    %c0_14 = arith.constant 0 : index
    %c0_15 = arith.constant 0 : index
    %24 = vector.load %arg6[%c0_14, %c0_15] : memref<16x32xf32, #tpu.memory_space<vmem>>, vector<16x32xf32>
    tpu.vector_store %arg6[%c0_14, %c0_15], %23 {strides = array<i32>} : memref<16x32xf32, #tpu.memory_space<vmem>>, vector<16x32xf32>,
    return
  }
  func.func @transform_0(%arg0: i32) -> (i32, i32) {
    %c0_i32 = arith.constant 0 : i32
    %c0_i32_0 = arith.constant 0 : i32
    return %arg0, %c0_i32 : i32, i32
  }
  func.func @transform_1(%arg0: i32) -> (i32, i32) {
    %c0_i32 = arith.constant 0 : i32
    %c0_i32_0 = arith.constant 0 : i32
    %c0_i32_1 = arith.constant 0 : i32
    return %c0_i32, %c0_i32_0 : i32, i32
  }
  func.func @transform_2(%arg0: i32) -> (i32, i32) {
    %c0_i32 = arith.constant 0 : i32
    %c0_i32_0 = arith.constant 0 : i32
    %c0_i32_1 = arith.constant 0 : i32
    return %c0_i32, %c0_i32_0 : i32, i32
  }
  func.func @transform_3(%arg0: i32) -> (i32, i32) {
    %c0_i32 = arith.constant 0 : i32
    %c0_i32_0 = arith.constant 0 : i32
    %c0_i32_1 = arith.constant 0 : i32
    return %c0_i32, %c0_i32_0 : i32, i32
  }
  func.func @transform_4(%arg0: i32) -> (i32, i32) {
    %c0_i32 = arith.constant 0 : i32
    %c0_i32_0 = arith.constant 0 : i32
    %c0_i32_1 = arith.constant 0 : i32
    return %c0_i32, %c0_i32_0 : i32, i32
  }
  func.func @transform_5(%arg0: i32) -> (i32, i32) {
    %c0_i32 = arith.constant 0 : i32
    %c0_i32_0 = arith.constant 0 : i32
    return %arg0, %c0_i32 : i32, i32
  }
}

</mosaic_0001>

<llo_original>
// kernel: tpu_custom_call.1
$region0: #{tpu_custom_call.1}
  #allocation0 [shape = 'u32[]', space=smem, size = 0x4, offset = 0x4, fixed_abs, tag = 'smem constant byte address 0x4 - core index']
  #allocation1 [shape = 'u32[72,128]{1,0:T(1,128)}', space=vmem, size = 0x9000, scoped, tag = 'internal scratch']
  %s0 = inlined_call_operand.vmem [shape: f32[16,32], index: 0, kind: input, shape index: {}]
  %s1 = inlined_call_operand.vmem [shape: f32[32,128], index: 1, kind: input, shape index: {}]
  %s2 = inlined_call_operand.vmem [shape: f32[1,128], index: 2, kind: input, shape index: {}]
  %s3 = inlined_call_operand.vmem [shape: f32[128,32], index: 3, kind: input, shape index: {}]
  %s4 = inlined_call_operand.vmem [shape: f32[1,32], index: 4, kind: input, shape index: {}]
  %s5 = inlined_call_operand.hbm [shape: f32[16,32], index: 5, kind: output, shape index: {}]
  %s6 = sld [smem:[#allocation0]]
  $region30: #{tpu_custom_call.1} parent=0
    _
  %s8 = ssub.s32 1, %s6
  %s9 = scalar_select 0, %s8, %s6
  $region1: #{tpu_custom_call.1} parent=0
    #allocation2 [shape = 'u8[8192]{0}', space=vmem, size = 0x2000, scoped, tag = 'output window, operand 0, single buffered']
    #allocation3 [shape = 's32[1]{0}', space=sflag, size = 0x4, scoped, tag = 'scoped memory for tpu_custom_call.1']
    %10 = vsyncpa [#allocation3], 0
    // Predicated region
    $region2: #{tpu_custom_call.1} parent=1 // pred_check
      _
    $region3: #{tpu_custom_call.1} parent=1 // pred_check_branch
      %12 = sbr.rel (0) target = $region5
    $region4: #{tpu_custom_call.1} parent=1 // pred_region
      _
    $region5: #{tpu_custom_call.1} parent=1 // pred_fallthru
      _
    // Predicated region
    $region6: #{tpu_custom_call.1} parent=1 // pred_check
      _
    $region7: #{tpu_custom_call.1} parent=1 // pred_check_branch
      %14 = sbr.rel (0) target = $region9
    $region8: #{tpu_custom_call.1} parent=1 // pred_region
      _
    $region9: #{tpu_custom_call.1} parent=1 // pred_fallthru
      _
    // Predicated region
    $region10: #{tpu_custom_call.1} parent=1 // pred_check
      _
    $region11: #{tpu_custom_call.1} parent=1 // pred_check_branch
      %16 = sbr.rel (0) target = $region13
    $region12: #{tpu_custom_call.1} parent=1 // pred_region
      _
    $region13: #{tpu_custom_call.1} parent=1 // pred_fallthru
      _
    // Predicated region
    $region14: #{tpu_custom_call.1} parent=1 // pred_check
      _
    $region15: #{tpu_custom_call.1} parent=1 // pred_check_branch
      %18 = sbr.rel (0) target = $region17
    $region16: #{tpu_custom_call.1} parent=1 // pred_region
      _
    $region17: #{tpu_custom_call.1} parent=1 // pred_fallthru
      _
    // Predicated region
    $region18: #{tpu_custom_call.1} parent=1 // pred_check
      _
    $region19: #{tpu_custom_call.1} parent=1 // pred_check_branch
      %20 = sbr.rel (0) target = $region21
    $region20: #{tpu_custom_call.1} parent=1 // pred_region
      _
    $region21: #{tpu_custom_call.1} parent=1 // pred_fallthru
      _
    %v21 = vld [vmem:[%s0] sm:$0xff]
    %v22 = vld [vmem:[%s0 + $0x8] sm:$0xff]
    %v23 = vld [vmem:[%s1] sm:$0xff]
    %v24 = vld [vmem:[%s1 + $0x8] sm:$0xff]
    %v25 = vld [vmem:[%s1 + $0x10] sm:$0xff]
    %v26 = vld [vmem:[%s1 + $0x18] sm:$0xff]
    %v27 = vld [vmem:[%s3] sm:$0xff]
    %v28 = vld [vmem:[%s3 + $0x8] sm:$0xff]
    %v29 = vld [vmem:[%s3 + $0x10] sm:$0xff]
    %v30 = vld [vmem:[%s3 + $0x18] sm:$0xff]
    %v31 = vld [vmem:[%s3 + $0x20] sm:$0xff]
    %v32 = vld [vmem:[%s3 + $0x28] sm:$0xff]
    %v33 = vld [vmem:[%s3 + $0x30] sm:$0xff]
    %v34 = vld [vmem:[%s3 + $0x38] sm:$0xff]
    %v35 = vld [vmem:[%s3 + $0x40] sm:$0xff]
    %v36 = vld [vmem:[%s3 + $0x48] sm:$0xff]
    %v37 = vld [vmem:[%s3 + $0x50] sm:$0xff]
    %v38 = vld [vmem:[%s3 + $0x58] sm:$0xff]
    %v39 = vld [vmem:[%s3 + $0x60] sm:$0xff]
    %v40 = vld [vmem:[%s3 + $0x68] sm:$0xff]
    %v41 = vld [vmem:[%s3 + $0x70] sm:$0xff]
    %v42 = vld [vmem:[%s3 + $0x78] sm:$0xff]
    %v43 = vld [vmem:[%s2] sm:$0x1]
    %v45 = vperm.slane %v43, 0
    %vm47 = vcmask 261120
    %v49 = vsel %vm47, %v21, 0
    %v52 = vsel %vm47, %v22, 0
    %54 = vmatpush.msra.mxu0 0.0
    %55 = vmatpush.msra.mxu0 0.0
    %56 = vmatpush.msra.mxu0 0.0
    %57 = vmatpush.msra.mxu0 0.0
    %58 = vmatpush.msra.mxu0 0.0
    %59 = vmatpush.msra.mxu0 0.0
    %60 = vmatpush.msra.mxu0 0.0
    %61 = vmatpush.msra.mxu0 0.0
    %62 = vmatpush.msra.mxu0 0.0
    %63 = vmatpush.msra.mxu0 0.0
    %64 = vmatpush.msra.mxu0 0.0
    %65 = vmatpush.msra.mxu0 0.0
    %66 = vmatpush.msra.mxu0 %v26
    %67 = vmatpush.msra.mxu0 %v25
    %68 = vmatpush.msra.mxu0 %v24
    %69 = vmatpush.msra.mxu0 %v23
    %70 = vmatmul.f32.gmra.mxu0 %v49
    %v71 = vpop.f32.mrf.mxu0
    %v72 = vadd.f32 %v45, %v71
    %73 = vmatmul.f32.gmra.mxu0 %v52
    %v74 = vpop.f32.mrf.mxu0
    %v75 = vadd.f32 %v45, %v74
    %76 = vdwg.mxu0
    %v77 = vmul.f32 %v72, %v72
    %v78 = vmul.f32 %v75, %v75
    %v79 = vmul.f32 %v77, %v72
    %v80 = vmul.f32 %v78, %v75
    %v81 = vmul.f32 %v79, 0.044715
    %v82 = vmul.f32 %v80, 0.044715
    %v83 = vadd.f32 %v72, %v81
    %v84 = vadd.f32 %v75, %v82
    %v85 = vmul.f32 %v83, 1.5957692
    %v86 = vmul.f32 %v84, 1.5957692
    %v87 = vsub.f32 0.0, %v85
    %v88 = vsub.f32 0.0, %v86
    %v89 = vmul.f32 %v87, 1.442695
    %v90 = vpow.pop %v89
    %v91 = vmul.f32 %v88, 1.442695
    %v92 = vpow.pop %v91
    %v93 = vadd.f32 %v90, 1.0
    %v94 = vadd.f32 %v92, 1.0
    %v95 = vrcp.pop %v93
    %v96 = vmul.f32 %v93, %v95
    %v97 = vsub.f32 1.0, %v96
    %v98 = vmul.f32 %v95, %v97
    %v99 = vadd.f32 %v95, %v98
    %vm100 = vweird.f32 %v93
    %vm101 = vweird.f32 %v95
    %vm102 = vmor %vm100, %vm101
    %v103 = vsel %vm102, %v95, %v99
    %v104 = vand.u32 2147483647, %v93
    %vm105 = vcmp.eq.f32.partialorder %v104, 8.507059e+37
    %v106 = vand.u32 %v93, 2147483648
    %v107 = vor.u32 1.1754944e-38, %v106
    %v108 = vsel %vm105, %v107, %v103
    %v109 = vmul.f32 %v72, %v108
    %v110 = vrcp.pop %v94
    %v111 = vmul.f32 %v94, %v110
    %v112 = vsub.f32 1.0, %v111
    %v113 = vmul.f32 %v110, %v112
    %v114 = vadd.f32 %v110, %v113
    %vm115 = vweird.f32 %v94
    %vm116 = vweird.f32 %v110
    %vm117 = vmor %vm115, %vm116
    %v118 = vsel %vm117, %v110, %v114
    %v119 = vand.u32 2147483647, %v94
    %vm120 = vcmp.eq.f32.partialorder %v119, 8.507059e+37
    %v121 = vand.u32 %v94, 2147483648
    %v122 = vor.u32 1.1754944e-38, %v121
    %v123 = vsel %vm120, %v122, %v118
    %v124 = vmul.f32 %v75, %v123
    %v125 = vld [vmem:[%s4] sm:$0x1]
    %v127 = vperm.slane %v125, 0
    %129 = vmatpush.msra.mxu0 %v42
    %130 = vmatpush.msra.mxu0 %v41
    %131 = vmatpush.msra.mxu0 %v40
    %132 = vmatpush.msra.mxu0 %v39
    %133 = vmatpush.msra.mxu0 %v38
    %134 = vmatpush.msra.mxu0 %v37
    %135 = vmatpush.msra.mxu0 %v36
    %136 = vmatpush.msra.mxu0 %v35
    %137 = vmatpush.msra.mxu0 %v34
    %138 = vmatpush.msra.mxu0 %v33
    %139 = vmatpush.msra.mxu0 %v32
    %140 = vmatpush.msra.mxu0 %v31
    %141 = vmatpush.msra.mxu0 %v30
    %142 = vmatpush.msra.mxu0 %v29
    %143 = vmatpush.msra.mxu0 %v28
    %144 = vmatpush.msra.mxu0 %v27
    %145 = vmatmul.f32.gmra.mxu0 %v109
    %v146 = vpop.f32.mrf.mxu0
    %v147 = vadd.f32 %v127, %v146
    %148 = vmatmul.f32.gmra.mxu0 %v124
    %v149 = vpop.f32.mrf.mxu0
    %v150 = vadd.f32 %v127, %v149
    %151 = vdwg.mxu0
    %152 = vst.msk [vmem:[#allocation2] sm:$0xff] %vm47, %v147
    %153 = vst.msk [vmem:[#allocation2 + $0x8] sm:$0xff] %vm47, %v150
    // Predicated region
    $region22: #{tpu_custom_call.1} parent=1 // pred_check
      _
    $region23: #{tpu_custom_call.1} parent=1 // pred_check_branch
      %155 = sbr.rel (0) target = $region25
    $region24: #{tpu_custom_call.1} parent=1 // pred_region
      %157 = vsyncadd [#allocation3], 0
      %s158 = sshll.u32 [#allocation2], 4
      %s159 = int_to_ptr.vmem [resolvable:$true] %s158
      %s160 = sshll.u32 %s5, 4
      %s161 = int_to_ptr.hbm [resolvable:$true] %s160
      %166 = dma.vmem_to_hbm [thread:$0]  %s159, 256, %s161, [#allocation3], 128, 128, 8
    $region25: #{tpu_custom_call.1} parent=1 // pred_fallthru
      _
    // Predicated region
    $region26: #{tpu_custom_call.1} parent=1 // pred_check
      _
    $region27: #{tpu_custom_call.1} parent=1 // pred_check_branch
      %168 = sbr.rel (0) target = $region29
    $region28: #{tpu_custom_call.1} parent=1 // pred_region
      %170 = dma.done [#allocation3], 256
    $region29: #{tpu_custom_call.1} parent=1 // pred_fallthru
      _
    %171 = vsyncpa [#allocation3], 1

</llo_original>
